<compile_context>
chip_gen: v5e
topology: v5e:2x2
jax: 0.10.0
libtpu: 0.0.40
codegen_flags: <defaults>
</compile_context>

<pallas_src>
import functools

import jax
import jax.numpy as jnp
from jax.experimental import pallas as pl
from jax.experimental.pallas import tpu as pltpu


def _round_up(x, m):
    return ((x + m - 1) // m) * m


def _cdiv(a, b):
    return -(-a // b)


def _rmse_kernel(*refs, feat, pack):
    """One (tr, lanes) block per grid step.

    lanes == pack * feat_pad; each packed row holds `pack` consecutive
    original rows.  The step's sum of per-row rmse values is written
    (broadcast) into this step's private lane-dense (1, 8, 128) output block.
    """
    if pack > 1:
        sel_ref, yt_ref, yp_ref, out_ref = refs
    else:
        yt_ref, yp_ref, out_ref = refs

    d = yp_ref[...].astype(jnp.float32) - yt_ref[...].astype(jnp.float32)
    sq = d * d                                            # (tr, lanes) f32

    if pack > 1:
        # Segmented lane sums via a 0/1 selection matmul on the otherwise
        # idle MXU.  f32-level accuracy with only 2 default-precision bf16
        # passes: exact split sq = hi + lo, both representable in bf16.
        sel = sel_ref[...]                                # (lanes, pack) bf16
        sq_hi = sq.astype(jnp.bfloat16)
        sq_lo = (sq - sq_hi.astype(jnp.float32)).astype(jnp.bfloat16)
        seg = (jnp.dot(sq_hi, sel, preferred_element_type=jnp.float32)
               + jnp.dot(sq_lo, sel, preferred_element_type=jnp.float32))
    else:
        # Feature axis is already lane-dense (padded to a multiple of 128).
        seg = jnp.sum(sq, axis=-1, keepdims=True)         # (tr, 1)

    # Divide by the TRUE feature count (padded feature lanes contribute 0).
    mse = seg * jnp.float32(1.0 / feat)
    r = jnp.sqrt(mse + jnp.float32(1e-7))                 # (tr, pack)

    # Per-step partial sum, splatted across the lane-dense output block.
    out_ref[...] = jnp.full(out_ref.shape, jnp.sum(r), dtype=jnp.float32)


def rmse_pallas(y_true, y_pred):
    assert y_true.shape == y_pred.shape
    feat = int(y_true.shape[-1])
    rows = 1
    for dim in y_true.shape[:-1]:
        rows *= int(dim)
    rows = max(rows, 1)

    # Lane-dense layout: pad the feature axis, then fold pack = 128//feat_pad
    # original rows into one 128-lane packed row when feat_pad < 128.
    if feat >= 128:
        feat_pad = _round_up(feat, 128)
        pack = 1
    else:
        feat_pad = int(pl.next_power_of_2(feat))          # divides 128
        pack = 128 // feat_pad
    lanes = pack * feat_pad

    itemsize = jnp.dtype(y_true.dtype).itemsize
    packed_rows = _cdiv(rows, pack)

    # Byte-budgeted row tile, keyed off device VMEM when available.
    # 2 inputs x 2 pipeline buffers x block + in-kernel f32/bf16 temporaries
    # must fit under vmem_limit_bytes on v5e / v6e / v7x (64 MiB physical).
    try:
        vmem_cap = int(pltpu.get_tpu_info().vmem_capacity_bytes)
    except Exception:
        vmem_cap = 64 * 1024 * 1024
    vmem_limit = max(16 * 1024 * 1024,
                     min(vmem_cap * 3 // 4, 48 * 1024 * 1024))
    target_block_bytes = min(4 * 1024 * 1024, vmem_limit // 10)

    max_tr = max(8, (target_block_bytes // max(lanes * itemsize, 1)) // 8 * 8)
    n_chunks = max(1, _cdiv(packed_rows, max_tr))
    tr = _round_up(_cdiv(packed_rows, n_chunks), 8)
    grid_n = _cdiv(packed_rows, tr)
    packed_rows_pad = grid_n * tr
    rows_pad = packed_rows_pad * pack

    pad_feat = feat_pad - feat
    pad_rows = rows_pad - rows

    yt2 = y_true.reshape(rows, feat)
    yp2 = y_pred.reshape(rows, feat)
    if pad_feat or pad_rows:
        yt2 = jnp.pad(yt2, ((0, pad_rows), (0, pad_feat)))
        yp2 = jnp.pad(yp2, ((0, pad_rows), (0, pad_feat)))
    yt2 = yt2.reshape(packed_rows_pad, lanes)
    yp2 = yp2.reshape(packed_rows_pad, lanes)

    kernel = functools.partial(_rmse_kernel, feat=feat, pack=pack)

    data_spec = pl.BlockSpec((tr, lanes), lambda i: (i, 0))
    in_specs = [data_spec, data_spec]
    operands = [yt2, yp2]
    if pack > 1:
        # 0/1 segment-selection matrix (exact in bf16), resident across steps.
        lane_idx = jnp.arange(lanes, dtype=jnp.int32)[:, None]
        col_idx = jnp.arange(pack, dtype=jnp.int32)[None, :]
        sel = (lane_idx // feat_pad == col_idx).astype(jnp.bfloat16)
        in_specs = [pl.BlockSpec((lanes, pack), lambda i: (0, 0))] + in_specs
        operands = [sel] + operands

    out = pl.pallas_call(
        kernel,
        out_shape=jax.ShapeDtypeStruct((grid_n, 8, 128), jnp.float32),
        grid_spec=pltpu.PrefetchScalarGridSpec(
            num_scalar_prefetch=0,
            grid=(grid_n,),
            in_specs=in_specs,
            out_specs=pl.BlockSpec((1, 8, 128), lambda i: (i, 0, 0)),
        ),
        compiler_params=pltpu.CompilerParams(
            dimension_semantics=("parallel",),   # independent per-step partials
            vmem_limit_bytes=vmem_limit,
        ),
    )(*operands)

    # Tiny final reduction in the wrapper: one lane per grid step holds that
    # step's partial sum of per-row rmse values.  Zero-padded rows each
    # contributed exactly sqrt(1e-7); subtract that constant once.
    total = jnp.sum(out[:, 0, 0])
    if pad_rows:
        total = total - jnp.float32(pad_rows) * jnp.sqrt(jnp.float32(1e-7))
    return total / jnp.float32(rows)


def rmse_ref(y_true, y_pred):
    mse = jnp.mean((y_pred - y_true) ** 2, axis=-1)
    return jnp.mean(jnp.sqrt(mse + 1e-7))


if __name__ == "__main__":
    key = jax.random.PRNGKey(0)
    k1, k2 = jax.random.split(key)
    shape = (2, 4, 16, 16)
    y_true = jax.random.normal(k1, shape, dtype=jnp.float32)
    y_pred = jax.random.normal(k2, shape, dtype=jnp.float32)

    out = jax.jit(rmse_pallas)(y_true, y_pred)
    out = jax.block_until_ready(out)
    ref = rmse_ref(y_true, y_pred)
    assert jnp.allclose(out, ref, rtol=1e-4, atol=1e-6), (out, ref)

    # Extra shapes: row padding (pack path) and feature padding (feat=10 -> 16).
    for extra_shape in [(5, 7, 16), (3, 5, 10)]:
        ka, kb = jax.random.split(jax.random.PRNGKey(1))
        a = jax.random.normal(ka, extra_shape, dtype=jnp.float32)
        b = jax.random.normal(kb, extra_shape, dtype=jnp.float32)
        o = jax.block_until_ready(jax.jit(rmse_pallas)(a, b))
        r = rmse_ref(a, b)
        assert jnp.allclose(o, r, rtol=1e-4, atol=1e-6), (extra_shape, o, r)

    print("KERNEL_OK")
</pallas_src>

<mosaic_0001>
module attributes {stable_mosaic.version = 11 : i64} {
  func.func @_rmse_kernel(%arg0: i32, %arg1: memref<128x8xbf16, #tpu.memory_space<vmem>>, %arg2: memref<16x128xf32, #tpu.memory_space<vmem>>, %arg3: memref<16x128xf32, #tpu.memory_space<vmem>>, %arg4: memref<1x8x128xf32, #tpu.memory_space<vmem>>) attributes {dimension_semantics = [#tpu.dimension_semantics<parallel>], iteration_bounds = array<i64: 1>, scalar_prefetch = 0 : i64, scratch_operands = 0 : i64, tpu.core_type = #tpu.core_type<tc>, window_params = [{pipeline_mode = #tpu.pipeline_mode<synchronous>, transform_indices = @transform_0, window_bounds = array<i64: 128, 8>}, {transform_indices = @transform_1, window_bounds = array<i64: 16, 128>}, {transform_indices = @transform_2, window_bounds = array<i64: 16, 128>}, {transform_indices = @transform_3, window_bounds = array<i64: 1, 8, 128>}]} {
    %c0 = arith.constant 0 : index
    %c0_0 = arith.constant 0 : index
    %0 = vector.load %arg3[%c0, %c0_0] : memref<16x128xf32, #tpu.memory_space<vmem>>, vector<16x128xf32>
    %c0_1 = arith.constant 0 : index
    %c0_2 = arith.constant 0 : index
    %1 = vector.load %arg2[%c0_1, %c0_2] : memref<16x128xf32, #tpu.memory_space<vmem>>, vector<16x128xf32>
    %2 = arith.subf %0, %1 : vector<16x128xf32>
    %3 = arith.mulf %2, %2 : vector<16x128xf32>
    %c0_3 = arith.constant 0 : index
    %c0_4 = arith.constant 0 : index
    %4 = vector.load %arg1[%c0_3, %c0_4] : memref<128x8xbf16, #tpu.memory_space<vmem>>, vector<128x8xbf16>
    %5 = arith.truncf %3 : vector<16x128xf32> to vector<16x128xbf16>
    %6 = arith.extf %5 : vector<16x128xbf16> to vector<16x128xf32>
    %7 = arith.subf %3, %6 : vector<16x128xf32>
    %8 = arith.truncf %7 : vector<16x128xf32> to vector<16x128xbf16>
    %cst = arith.constant dense<0.000000e+00> : vector<16x8xf32>
    %9 = tpu.matmul %5, %4, %cst {dimension_numbers = #tpu.dot_dimension_numbers<[1], [0], [0], [1], [0, 0, 1, 1], [], []>} : vector<16x128xbf16>, vector<128x8xbf16>, vector<16x8xf32> -> vector<16x8xf32>
    %cst_5 = arith.constant dense<0.000000e+00> : vector<16x8xf32>
    %10 = tpu.matmul %8, %4, %cst_5 {dimension_numbers = #tpu.dot_dimension_numbers<[1], [0], [0], [1], [0, 0, 1, 1], [], []>} : vector<16x128xbf16>, vector<128x8xbf16>, vector<16x8xf32> -> vector<16x8xf32>
    %11 = arith.addf %9, %10 : vector<16x8xf32>
    %cst_6 = arith.constant 6.250000e-02 : f32
    %12 = vector.broadcast %cst_6 : f32 to vector<16x8xf32>
    %13 = arith.mulf %11, %12 : vector<16x8xf32>
    %cst_7 = arith.constant 1.000000e-07 : f32
    %14 = vector.broadcast %cst_7 : f32 to vector<16x8xf32>
    %15 = arith.addf %13, %14 : vector<16x8xf32>
    %16 = math.sqrt %15 : vector<16x8xf32>
    %17 = vector.shape_cast %16 : vector<16x8xf32> to vector<1x16x8xf32>
    %cst_8 = arith.constant dense<0.000000e+00> : vector<1xf32>
    %18 = vector.multi_reduction <add>, %17, %cst_8 [1, 2] : vector<1x16x8xf32> to vector<1xf32>
    %19 = vector.shape_cast %18 : vector<1xf32> to vector<1x1x1xf32>
    %20 = vector.extract %19[0, 0, 0] : f32 from vector<1x1x1xf32>
    %21 = vector.broadcast %20 : f32 to vector<1x8x128xf32>
    %c0_9 = arith.constant 0 : index
    %c0_10 = arith.constant 0 : index
    %c0_11 = arith.constant 0 : index
    %22 = vector.load %arg4[%c0_9, %c0_10, %c0_11] : memref<1x8x128xf32, #tpu.memory_space<vmem>>, vector<1x8x128xf32>
    tpu.vector_store %arg4[%c0_9, %c0_10, %c0_11], %21 {strides = array<i32>} : memref<1x8x128xf32, #tpu.memory_space<vmem>>, vector<1x8x128xf32>,
    return
  }
  func.func @transform_0(%arg0: i32) -> (i32, i32) {
    %c0_i32 = arith.constant 0 : i32
    %c0_i32_0 = arith.constant 0 : i32
    %c0_i32_1 = arith.constant 0 : i32
    return %c0_i32, %c0_i32_0 : i32, i32
  }
  func.func @transform_1(%arg0: i32) -> (i32, i32) {
    %c0_i32 = arith.constant 0 : i32
    %c0_i32_0 = arith.constant 0 : i32
    return %arg0, %c0_i32 : i32, i32
  }
  func.func @transform_2(%arg0: i32) -> (i32, i32) {
    %c0_i32 = arith.constant 0 : i32
    %c0_i32_0 = arith.constant 0 : i32
    return %arg0, %c0_i32 : i32, i32
  }
  func.func @transform_3(%arg0: i32) -> (i32, i32, i32) {
    %c0_i32 = arith.constant 0 : i32
    %c0_i32_0 = arith.constant 0 : i32
    %c0_i32_1 = arith.constant 0 : i32
    return %arg0, %c0_i32, %c0_i32_0 : i32, i32, i32
  }
}

</mosaic_0001>

<llo_original>
// kernel: rmse_pallas.1
$region0: #{rmse_pallas.1}
  #allocation0 [shape = 'u32[]', space=smem, size = 0x4, offset = 0x4, fixed_abs, tag = 'smem constant byte address 0x4 - core index']
  #allocation1 [shape = 'u32[72,128]{1,0:T(1,128)}', space=vmem, size = 0x9000, scoped, tag = 'internal scratch']
  %s0 = inlined_call_operand.vmem [shape: bf16[128,8], index: 0, kind: input, shape index: {}]
  %s1 = inlined_call_operand.vmem [shape: f32[16,128], index: 1, kind: input, shape index: {}]
  %s2 = inlined_call_operand.vmem [shape: f32[16,128], index: 2, kind: input, shape index: {}]
  %s3 = inlined_call_operand.vmem [shape: f32[1,8,128], index: 3, kind: output, shape index: {}]
  %s4 = sld [smem:[#allocation0]]
  $region22: #{rmse_pallas.1} parent=0
    _
  %s6 = ssub.s32 1, %s4
  %s7 = scalar_select 0, %s6, %s4
  // Predicated region
  $region2: #{rmse_pallas.1} parent=0 // pred_check
    _
  $region3: #{rmse_pallas.1} parent=0 // pred_check_branch
    %9 = sbr.rel (0) target = $region5
  $region4: #{rmse_pallas.1} parent=0 // pred_region
    _
  $region5: #{rmse_pallas.1} parent=0 // pred_fallthru
    _
  // Predicated region
  $region6: #{rmse_pallas.1} parent=0 // pred_check
    _
  $region7: #{rmse_pallas.1} parent=0 // pred_check_branch
    %11 = sbr.rel (0) target = $region9
  $region8: #{rmse_pallas.1} parent=0 // pred_region
    _
  $region9: #{rmse_pallas.1} parent=0 // pred_fallthru
    _
  // Predicated region
  $region10: #{rmse_pallas.1} parent=0 // pred_check
    _
  $region11: #{rmse_pallas.1} parent=0 // pred_check_branch
    %13 = sbr.rel (0) target = $region13
  $region12: #{rmse_pallas.1} parent=0 // pred_region
    _
  $region13: #{rmse_pallas.1} parent=0 // pred_fallthru
    _
  %v14 = vld [vmem:[%s2] sm:$0xff]
  %v15 = vld [vmem:[%s2 + $0x8] sm:$0xff]
  %v16 = vld [vmem:[%s1] sm:$0xff]
  %v17 = vld [vmem:[%s1 + $0x8] sm:$0xff]
  %v18 = vsub.f32 %v14, %v16
  %v19 = vsub.f32 %v15, %v17
  %v20 = vmul.f32 %v18, %v18
  %v21 = vmul.f32 %v19, %v19
  %v22 = vld [vmem:[%s0] sm:$0xf]
  %v23 = vld [vmem:[%s0 + $0x4] sm:$0xf]
  %v24 = vld [vmem:[%s0 + $0x8] sm:$0xf]
  %v25 = vld [vmem:[%s0 + $0xc] sm:$0xf]
  %v26 = vld [vmem:[%s0 + $0x10] sm:$0xf]
  %v27 = vld [vmem:[%s0 + $0x14] sm:$0xf]
  %v28 = vld [vmem:[%s0 + $0x18] sm:$0xf]
  %v29 = vld [vmem:[%s0 + $0x1c] sm:$0xf]
  %v30 = vld [vmem:[%s0 + $0x20] sm:$0xf]
  %v31 = vld [vmem:[%s0 + $0x24] sm:$0xf]
  %v32 = vld [vmem:[%s0 + $0x28] sm:$0xf]
  %v33 = vld [vmem:[%s0 + $0x2c] sm:$0xf]
  %v34 = vld [vmem:[%s0 + $0x30] sm:$0xf]
  %v35 = vld [vmem:[%s0 + $0x34] sm:$0xf]
  %v36 = vld [vmem:[%s0 + $0x38] sm:$0xf]
  %v37 = vld [vmem:[%s0 + $0x3c] sm:$0xf]
  %v38 = vpack.c.bf16 %v20, %v20
  %v39 = vpack.c.bf16 %v21, %v21
  %v40 = vunpack.c.l.bf16 %v38
  %v41 = vunpack.c.l.bf16 %v39
  %v42 = vsub.f32 %v20, %v40
  %v43 = vsub.f32 %v21, %v41
  %v44 = vpack.c.bf16 %v43, %v42
  %v61 = vunpack.c.l.b16 %v22
  %v62 = vunpack.c.l.b16 %v23
  %v63 = vunpack.c.l.b16 %v24
  %v64 = vunpack.c.l.b16 %v25
  %v65 = vunpack.c.l.b16 %v26
  %v66 = vunpack.c.l.b16 %v27
  %v67 = vunpack.c.l.b16 %v28
  %v68 = vunpack.c.l.b16 %v29
  %v69 = vunpack.c.l.b16 %v30
  %v70 = vunpack.c.l.b16 %v31
  %v71 = vunpack.c.l.b16 %v32
  %v72 = vunpack.c.l.b16 %v33
  %v73 = vunpack.c.l.b16 %v34
  %v74 = vunpack.c.l.b16 %v35
  %v75 = vunpack.c.l.b16 %v36
  %v76 = vunpack.c.l.b16 %v37
  %v77 = vpack.c.b16 %v62, %v61
  %v78 = vpack.c.b16 %v64, %v63
  %v79 = vpack.c.b16 %v66, %v65
  %v80 = vpack.c.b16 %v68, %v67
  %v81 = vpack.c.b16 %v70, %v69
  %v82 = vpack.c.b16 %v72, %v71
  %v83 = vpack.c.b16 %v74, %v73
  %v84 = vpack.c.b16 %v76, %v75
  %93 = vmatpush.bf16.msra.mxu0 %v84
  %94 = vmatpush.bf16.msra.mxu0 %v83
  %95 = vmatpush.bf16.msra.mxu0 %v82
  %96 = vmatpush.bf16.msra.mxu0 %v81
  %97 = vmatpush.bf16.msra.mxu0 %v80
  %98 = vmatpush.bf16.msra.mxu0 %v79
  %99 = vmatpush.bf16.msra.mxu0 %v78
  %100 = vmatpush.bf16.msra.mxu0 %v77
  %101 = vmatmul.bf16.gmra.mxu0 %v44
  %v102 = vpop.f32.mrf.mxu0
  %v103 = vadd.f32 0.0, %v102
  %v104 = vpop.f32.mrf.mxu0
  %v105 = vadd.f32 0.0, %v104
  %106 = vdwg.mxu0
  %v109 = vunpack.c.l.b16 %v38
  %v110 = vunpack.c.l.b16 %v39
  %v111 = vpack.c.b16 %v110, %v109
  %113 = vmatpush.bf16.msra.mxu0 %v84
  %114 = vmatpush.bf16.msra.mxu0 %v83
  %115 = vmatpush.bf16.msra.mxu0 %v82
  %116 = vmatpush.bf16.msra.mxu0 %v81
  %117 = vmatpush.bf16.msra.mxu0 %v80
  %118 = vmatpush.bf16.msra.mxu0 %v79
  %119 = vmatpush.bf16.msra.mxu0 %v78
  %120 = vmatpush.bf16.msra.mxu0 %v77
  %121 = vmatmul.bf16.gmra.mxu0 %v111
  %v122 = vpop.f32.mrf.mxu0
  %v123 = vadd.f32 %v103, %v122
  %v124 = vpop.f32.mrf.mxu0
  %v125 = vadd.f32 %v105, %v124
  %126 = vdwg.mxu0
  %v127 = vmul.f32 %v123, 0.0625
  %v128 = vmul.f32 %v125, 0.0625
  %v129 = vadd.f32 %v127, 1e-07
  %v130 = vadd.f32 %v128, 1e-07
  %v131 = vrsqrt.pop %v129
  %v132 = vmul.f32 %v131, %v129
  %v133 = vmul.f32 %v132, %v131
  %v134 = vmul.f32 0.5, %v133
  %v135 = vsub.f32 1.5, %v134
  %v136 = vmul.f32 %v131, %v135
  %v137 = vmul.f32 %v129, %v136
  %vm138 = vcmp.eq.f32.partialorder %v129, inf
  %v139 = vsel %vm138, %v129, %v137
  %vm140 = vcmp.eq.f32.partialorder %v129, 0.0
  %v141 = vand.u32 %v129, 2147483648
  %v142 = vsel %vm140, %v141, %v139
  %v143 = vrsqrt.pop %v130
  %v144 = vmul.f32 %v143, %v130
  %v145 = vmul.f32 %v144, %v143
  %v146 = vmul.f32 0.5, %v145
  %v147 = vsub.f32 1.5, %v146
  %v148 = vmul.f32 %v143, %v147
  %v149 = vmul.f32 %v130, %v148
  %vm150 = vcmp.eq.f32.partialorder %v130, inf
  %v151 = vsel %vm150, %v130, %v149
  %vm152 = vcmp.eq.f32.partialorder %v130, 0.0
  %v153 = vand.u32 %v130, 2147483648
  %v154 = vsel %vm152, %v153, %v151
  %vm155 = vcmask 64512
  %v156 = vsel %vm155, %v142, 0.0
  %v157 = vsel %vm155, %v154, 0.0
  %v158 = vadd.f32 %v156, %v157
  %159 = vadd.xlane.f32.xlu0 %v158
  %v160 = vpop.xlane.xlu0 %159
  %v161 = vrot.slane %v160, 4
  %v162 = vadd.f32 %v160, %v161
  %v163 = vrot.slane %v162, 2
  %v164 = vadd.f32 %v162, %v163
  %v165 = vrot.slane %v164, 1
  %v166 = vadd.f32 %v164, %v165
  %s167 = vtos %v166
  %v168 = vstv %s167
  %169 = vst [vmem:[%s3] sm:$0xff] %v168
  // Predicated region
  $region14: #{rmse_pallas.1} parent=0 // pred_check
    _
  $region15: #{rmse_pallas.1} parent=0 // pred_check_branch
    %171 = sbr.rel (0) target = $region17
  $region16: #{rmse_pallas.1} parent=0 // pred_region
    _
  $region17: #{rmse_pallas.1} parent=0 // pred_fallthru
    _
  // Predicated region
  $region18: #{rmse_pallas.1} parent=0 // pred_check
    _
  $region19: #{rmse_pallas.1} parent=0 // pred_check_branch
    %173 = sbr.rel (0) target = $region21
  $region20: #{rmse_pallas.1} parent=0 // pred_region
    _
  $region21: #{rmse_pallas.1} parent=0 // pred_fallthru
    _

</llo_original>
